<compile_context>
chip_gen: v5e
topology: v5e:2x2
jax: 0.10.0
libtpu: 0.0.40
codegen_flags: <defaults>
</compile_context>

<pallas_src>
import functools

import jax
import jax.numpy as jnp
from jax import lax
from jax.experimental import pallas as pl
from jax.experimental.pallas import tpu as pltpu


# ----------------------------------------------------------------------------
# helpers
# ----------------------------------------------------------------------------
def _round_up(a, m):
    return ((a + m - 1) // m) * m


def _pick_tile_rows(b, c, budget_bytes):
    """Rows per tile: multiple of 8, <= 512, tile bytes (f32) <= budget."""
    tb = max(8, budget_bytes // max(1, c * 4))
    tb = min(tb, 512)
    tb = max(8, (tb // 8) * 8)
    tb = min(tb, _round_up(b, 8))
    return tb


def _sign(v):
    one = jnp.float32(1.0)
    return jnp.where(v > 0, one, jnp.where(v < 0, -one, jnp.float32(0.0)))


def _per_sample_ce(x, onehot_mask):
    """loss[i] = logsumexp(x[i]) - x[i, t[i]]   (x already f32, (TB, C))."""
    m = jnp.max(x, axis=-1, keepdims=True)
    xm = x - m
    lse = jnp.log(jnp.sum(jnp.exp(xm), axis=-1, keepdims=True))
    picked = jnp.sum(jnp.where(onehot_mask, xm, 0.0), axis=-1, keepdims=True)
    return lse - picked                                     # (TB, 1)


# ----------------------------------------------------------------------------
# Pallas kernels
# ----------------------------------------------------------------------------
def _ce_mean_kernel(x_ref, t_ref, out_ref, acc_ref, *, batch):
    """Fused per-sample CE + mean over the global batch -> (1,1) SMEM scalar."""
    i = pl.program_id(0)

    @pl.when(i == 0)
    def _():
        acc_ref[0] = jnp.float32(0.0)

    x = x_ref[...].astype(jnp.float32)                       # (TB, C)
    tgt = t_ref[...]                                         # (TB, 1) int32
    tb, c = x.shape
    cls = lax.broadcasted_iota(jnp.int32, (tb, c), 1)
    onehot_mask = cls == tgt

    loss = _per_sample_ce(x, onehot_mask)                    # (TB, 1)

    row = lax.broadcasted_iota(jnp.int32, (tb, 1), 0) + i * tb
    valid = row < batch                                      # mask padded rows
    acc_ref[0] += jnp.sum(jnp.where(valid, loss, 0.0))

    @pl.when(i == pl.num_programs(0) - 1)
    def _():
        out_ref[0, 0] = acc_ref[0] * jnp.float32(1.0 / batch)


def _flooding_kernel(x_ref, t_ref, x0_ref, out_ref, acc_ref, *,
                     batch, steps, flooding):
    """Fused: per-sample CE, in-kernel 35-step Rprop lower bound (closed-form
    softmax gradient), and the flooding reduction |loss-flood|.mean()+flood.mean()."""
    i = pl.program_id(0)

    @pl.when(i == 0)
    def _():
        acc_ref[0] = jnp.float32(0.0)

    x = x_ref[...].astype(jnp.float32)                       # (TB, C)
    tgt = t_ref[...]                                         # (TB, 1) int32
    tb, c = x.shape
    cls = lax.broadcasted_iota(jnp.int32, (tb, c), 1)
    onehot_mask = cls == tgt
    onehot = onehot_mask.astype(jnp.float32)

    loss = _per_sample_ce(x, onehot_mask)                    # (TB, 1) actual loss

    # ---- Rprop(lr=1.0, etas=(0.5,1.2), step_sizes=(1e-6,50)) on random init X0.
    # Gradient of mean CE wrt X is (softmax(X) - onehot) / B (closed form).
    inv_b = jnp.float32(1.0 / batch)

    def body(_, carry):
        X, step, prev_g, min_loss = carry
        L = _per_sample_ce(X, onehot_mask)
        m = jnp.max(X, axis=-1, keepdims=True)
        e = jnp.exp(X - m)
        sm = e / jnp.sum(e, axis=-1, keepdims=True)
        g = (sm - onehot) * inv_b
        s = g * prev_g
        step = jnp.where(s > 0, jnp.minimum(step * 1.2, 50.0),
                jnp.where(s < 0, jnp.maximum(step * 0.5, 1e-6), step))
        g_eff = jnp.where(s < 0, 0.0, g)     # torch Rprop zeroes grad on sign flip
        X = X - _sign(g_eff) * step
        return X, step, g_eff, jnp.minimum(min_loss, L)

    carry0 = (x0_ref[...].astype(jnp.float32),
              jnp.full((tb, c), 1.0, jnp.float32),
              jnp.zeros((tb, c), jnp.float32),
              jnp.full((tb, 1), jnp.inf, jnp.float32))
    _, _, _, min_loss = lax.fori_loop(0, steps, body, carry0)

    flood = min_loss + jnp.float32(flooding)                 # (TB, 1)

    row = lax.broadcasted_iota(jnp.int32, (tb, 1), 0) + i * tb
    valid = row < batch
    # |loss - flood|.mean() + flood.mean()  ==  sum(|loss-flood| + flood) / B
    acc_ref[0] += jnp.sum(jnp.where(valid, jnp.abs(loss - flood) + flood, 0.0))

    @pl.when(i == pl.num_programs(0) - 1)
    def _():
        out_ref[0, 0] = acc_ref[0] * jnp.float32(1.0 / batch)


# ----------------------------------------------------------------------------
# Pallas wrappers
# ----------------------------------------------------------------------------
def _mean_ce_pallas(x, target):
    b, c = x.shape
    tb = _pick_tile_rows(b, c, 2 * 1024 * 1024)              # conservative for v5e/v7x
    bp = _round_up(b, tb)
    if bp != b:
        x = jnp.pad(x, ((0, bp - b), (0, 0)))
        target = jnp.pad(target, (0, bp - b))
    t2 = target.astype(jnp.int32).reshape(bp, 1)

    out = pl.pallas_call(
        functools.partial(_ce_mean_kernel, batch=b),
        out_shape=jax.ShapeDtypeStruct((1, 1), jnp.float32),
        grid=(bp // tb,),
        in_specs=[
            pl.BlockSpec((tb, c), lambda i: (i, 0)),
            pl.BlockSpec((tb, 1), lambda i: (i, 0)),
        ],
        out_specs=pl.BlockSpec(memory_space=pltpu.MemorySpace.SMEM),
        scratch_shapes=[pltpu.SMEM((1,), jnp.float32)],
        compiler_params=pltpu.CompilerParams(
            dimension_semantics=("arbitrary",)),
    )(x, t2)
    return out[0, 0]


def _flooding_pallas(x, target, x0, flooding, steps):
    b, c = x.shape
    # Rprop loop carries ~8 live (TB, C) f32 arrays -> smaller per-array budget.
    tb = _pick_tile_rows(b, c, 512 * 1024)
    tb = min(tb, 256)
    bp = _round_up(b, tb)
    if bp != b:
        x = jnp.pad(x, ((0, bp - b), (0, 0)))
        target = jnp.pad(target, (0, bp - b))
        x0 = jnp.pad(x0, ((0, bp - b), (0, 0)))
    t2 = target.astype(jnp.int32).reshape(bp, 1)

    out = pl.pallas_call(
        functools.partial(_flooding_kernel, batch=b, steps=steps,
                          flooding=float(flooding)),
        out_shape=jax.ShapeDtypeStruct((1, 1), jnp.float32),
        grid=(bp // tb,),
        in_specs=[
            pl.BlockSpec((tb, c), lambda i: (i, 0)),
            pl.BlockSpec((tb, 1), lambda i: (i, 0)),
            pl.BlockSpec((tb, c), lambda i: (i, 0)),
        ],
        out_specs=pl.BlockSpec(memory_space=pltpu.MemorySpace.SMEM),
        scratch_shapes=[pltpu.SMEM((1,), jnp.float32)],
        compiler_params=pltpu.CompilerParams(
            dimension_semantics=("arbitrary",)),
    )(x, t2, x0)
    return out[0, 0]


# ----------------------------------------------------------------------------
# Flooding.forward
# ----------------------------------------------------------------------------
def flooding_forward(x, target, flooding=None, steps=35):
    b, c = x.shape
    target = target.astype(jnp.int32)
    if flooding is None:
        return _mean_ce_pallas(x, target)
    # TODO(synk): torch.randn(manual_seed(0)) cannot be bit-matched from JAX.
    x0 = jax.random.normal(jax.random.PRNGKey(0), (b, c), dtype=jnp.float32)
    return _flooding_pallas(x, target, x0, flooding, steps)


# ----------------------------------------------------------------------------
# plain-JAX references (for the self-check in __main__)
# ----------------------------------------------------------------------------
def _ref_per_sample_ce(x, target):
    xf = x.astype(jnp.float32)
    lse = jax.nn.logsumexp(xf, axis=-1)
    picked = jnp.take_along_axis(xf, target[:, None].astype(jnp.int32), axis=-1)[:, 0]
    return lse - picked


def _ref_mean_ce(x, target):
    return jnp.mean(_ref_per_sample_ce(x, target))


def _ref_flooding(x, target, flooding, steps=35):
    b, c = x.shape
    loss = _ref_per_sample_ce(x, target)
    X = jax.random.normal(jax.random.PRNGKey(0), (b, c), dtype=jnp.float32)
    onehot = jax.nn.one_hot(target, c, dtype=jnp.float32)
    step = jnp.ones((b, c), jnp.float32)
    prev = jnp.zeros((b, c), jnp.float32)
    min_loss = jnp.full((b,), jnp.inf, jnp.float32)
    for _ in range(steps):
        L = jax.nn.logsumexp(X, axis=-1) - jnp.sum(X * onehot, axis=-1)
        g = (jax.nn.softmax(X, axis=-1) - onehot) / b
        s = g * prev
        step = jnp.where(s > 0, jnp.minimum(step * 1.2, 50.0),
                jnp.where(s < 0, jnp.maximum(step * 0.5, 1e-6), step))
        g = jnp.where(s < 0, 0.0, g)
        X = X - jnp.sign(g) * step
        prev = g
        min_loss = jnp.minimum(min_loss, L)
    flood = min_loss + jnp.float32(flooding)
    return jnp.mean(jnp.abs(loss - flood)) + jnp.mean(flood)


# ----------------------------------------------------------------------------
if __name__ == "__main__":
    B, C = 8, 32
    key = jax.random.PRNGKey(0)
    kx, kt = jax.random.split(key)
    x = jax.random.normal(kx, (B, C), dtype=jnp.float32)
    target = jax.random.randint(kt, (B,), 0, C, dtype=jnp.int32)

    out_none = flooding_forward(x, target, flooding=None)
    out_flood = flooding_forward(x, target, flooding=0.1)
    jax.block_until_ready((out_none, out_flood))

    ref_none = _ref_mean_ce(x, target)
    ref_flood = _ref_flooding(x, target, 0.1)

    assert jnp.allclose(out_none, ref_none, atol=1e-5, rtol=1e-5), (out_none, ref_none)
    assert jnp.allclose(out_flood, ref_flood, atol=5e-3, rtol=5e-3), (out_flood, ref_flood)

    print("KERNEL_OK")
</pallas_src>

<mosaic_0001>
module attributes {stable_mosaic.version = 11 : i64} {
  func.func @_ce_mean_kernel(%arg0: i32, %arg1: memref<8x32xf32, #tpu.memory_space<vmem>>, %arg2: memref<8x1xi32, #tpu.memory_space<vmem>>, %arg3: memref<1x1xf32, #tpu.memory_space<smem>>, %arg4: memref<1xf32, #tpu.memory_space<smem>>) attributes {dimension_semantics = [#tpu.dimension_semantics<arbitrary>], iteration_bounds = array<i64: 1>, scalar_prefetch = 0 : i64, scratch_operands = 1 : i64, tpu.core_type = #tpu.core_type<tc>, window_params = [{transform_indices = @transform_0, window_bounds = array<i64: 8, 32>}, {transform_indices = @transform_1, window_bounds = array<i64: 8, 1>}, {transform_indices = @transform_2, window_bounds = array<i64: 1, 1>}]} {
    %c0_i32 = arith.constant 0 : i32
    %0 = arith.cmpi eq, %arg0, %c0_i32 : i32
    %1 = arith.extui %0 : i1 to i32
    %c0_i32_0 = arith.constant 0 : i32
    %2 = arith.cmpi ne, %1, %c0_i32_0 : i32
    scf.if %2 {
      %cst_14 = arith.constant 0.000000e+00 : f32
      %c0_15 = arith.constant 0 : index
      %39 = memref.load %arg4[%c0_15] : memref<1xf32, #tpu.memory_space<smem>>
      memref.store %cst_14, %arg4[%c0_15] : memref<1xf32, #tpu.memory_space<smem>>
    } else {
    }
    %c0 = arith.constant 0 : index
    %c0_1 = arith.constant 0 : index
    %3 = vector.load %arg1[%c0, %c0_1] : memref<8x32xf32, #tpu.memory_space<vmem>>, vector<8x32xf32>
    %c0_2 = arith.constant 0 : index
    %c0_3 = arith.constant 0 : index
    %4 = vector.load %arg2[%c0_2, %c0_3] : memref<8x1xi32, #tpu.memory_space<vmem>>, vector<8x1xi32>
    %5 = tpu.iota {dimensions = array<i32: 1>} : vector<8x32xi32>
    %6 = vector.broadcast %4 : vector<8x1xi32> to vector<8x32xi32>
    %7 = arith.cmpi eq, %5, %6 : vector<8x32xi32>
    %cst = arith.constant dense<0xFF800000> : vector<8xf32>
    %8 = vector.multi_reduction <maximumf>, %3, %cst [1] : vector<8x32xf32> to vector<8xf32>
    %9 = vector.shape_cast %8 : vector<8xf32> to vector<8x1xf32>
    %10 = vector.broadcast %9 : vector<8x1xf32> to vector<8x32xf32>
    %11 = arith.subf %3, %10 : vector<8x32xf32>
    %12 = math.exp %11 : vector<8x32xf32>
    %cst_4 = arith.constant dense<0.000000e+00> : vector<8xf32>
    %13 = vector.multi_reduction <add>, %12, %cst_4 [1] : vector<8x32xf32> to vector<8xf32>
    %14 = vector.shape_cast %13 : vector<8xf32> to vector<8x1xf32>
    %15 = math.log %14 : vector<8x1xf32>
    %cst_5 = arith.constant 0.000000e+00 : f32
    %16 = vector.broadcast %cst_5 : f32 to vector<8x32xf32>
    %17 = arith.select %7, %11, %16 : vector<8x32xi1>, vector<8x32xf32>
    %cst_6 = arith.constant dense<0.000000e+00> : vector<8xf32>
    %18 = vector.multi_reduction <add>, %17, %cst_6 [1] : vector<8x32xf32> to vector<8xf32>
    %19 = vector.shape_cast %18 : vector<8xf32> to vector<8x1xf32>
    %20 = arith.subf %15, %19 : vector<8x1xf32>
    %21 = tpu.iota {dimensions = array<i32: 0>} : vector<8x1xi32>
    %c8_i32 = arith.constant 8 : i32
    %22 = arith.muli %arg0, %c8_i32 : i32
    %23 = vector.broadcast %22 : i32 to vector<8x1xi32>
    %24 = arith.addi %21, %23 : vector<8x1xi32>
    %c8_i32_7 = arith.constant 8 : i32
    %25 = vector.broadcast %c8_i32_7 : i32 to vector<8x1xi32>
    %26 = arith.cmpi slt, %24, %25 : vector<8x1xi32>
    %c0_8 = arith.constant 0 : index
    %27 = memref.load %arg4[%c0_8] : memref<1xf32, #tpu.memory_space<smem>>
    %cst_9 = arith.constant 0.000000e+00 : f32
    %28 = vector.broadcast %cst_9 : f32 to vector<8x1xf32>
    %29 = arith.select %26, %20, %28 : vector<8x1xi1>, vector<8x1xf32>
    %30 = vector.shape_cast %29 : vector<8x1xf32> to vector<1x8x1xf32>
    %cst_10 = arith.constant dense<0.000000e+00> : vector<1xf32>
    %31 = vector.multi_reduction <add>, %30, %cst_10 [1, 2] : vector<1x8x1xf32> to vector<1xf32>
    %32 = vector.shape_cast %31 : vector<1xf32> to vector<1x1x1xf32>
    %33 = vector.extract %32[0, 0, 0] : f32 from vector<1x1x1xf32>
    %34 = arith.addf %27, %33 : f32
    %c0_11 = arith.constant 0 : index
    %35 = memref.load %arg4[%c0_11] : memref<1xf32, #tpu.memory_space<smem>>
    memref.store %34, %arg4[%c0_11] : memref<1xf32, #tpu.memory_space<smem>>
    %c0_i32_12 = arith.constant 0 : i32
    %36 = arith.cmpi eq, %arg0, %c0_i32_12 : i32
    %37 = arith.extui %36 : i1 to i32
    %c0_i32_13 = arith.constant 0 : i32
    %38 = arith.cmpi ne, %37, %c0_i32_13 : i32
    scf.if %38 {
      %c0_14 = arith.constant 0 : index
      %39 = memref.load %arg4[%c0_14] : memref<1xf32, #tpu.memory_space<smem>>
      %cst_15 = arith.constant 1.250000e-01 : f32
      %40 = arith.mulf %39, %cst_15 : f32
      %c0_16 = arith.constant 0 : index
      %c0_17 = arith.constant 0 : index
      %41 = memref.load %arg3[%c0_16, %c0_17] : memref<1x1xf32, #tpu.memory_space<smem>>
      memref.store %40, %arg3[%c0_16, %c0_17] : memref<1x1xf32, #tpu.memory_space<smem>>
    } else {
    }
    return
  }
  func.func @transform_0(%arg0: i32) -> (i32, i32) {
    %c0_i32 = arith.constant 0 : i32
    %c0_i32_0 = arith.constant 0 : i32
    return %arg0, %c0_i32 : i32, i32
  }
  func.func @transform_1(%arg0: i32) -> (i32, i32) {
    %c0_i32 = arith.constant 0 : i32
    %c0_i32_0 = arith.constant 0 : i32
    return %arg0, %c0_i32 : i32, i32
  }
  func.func @transform_2(%arg0: i32) -> (i32, i32) {
    %c0_i32 = arith.constant 0 : i32
    %c0_i32_0 = arith.constant 0 : i32
    %c0_i32_1 = arith.constant 0 : i32
    return %c0_i32, %c0_i32_0 : i32, i32
  }
}

</mosaic_0001>

<llo_original>
// kernel: tpu_custom_call.1
$region0: #{tpu_custom_call.1}
  #allocation0 [shape = 'u32[]', space=smem, size = 0x4, offset = 0x4, fixed_abs, tag = 'smem constant byte address 0x4 - core index']
  #allocation1 [shape = 'u32[72,128]{1,0:T(1,128)}', space=vmem, size = 0x9000, scoped, tag = 'internal scratch']
  #allocation2 [shape = 'f32[1]{0:T(128)}', space=smem, size = 0x200, scoped, tag = 'scratch operand']
  %s0 = inlined_call_operand.vmem [shape: f32[8,32], index: 0, kind: input, shape index: {}]
  %s1 = inlined_call_operand.vmem [shape: s32[8,1], index: 1, kind: input, shape index: {}]
  %s2 = inlined_call_operand.hbm [shape: f32[1,1], index: 2, kind: output, shape index: {}]
  %s3 = sld [smem:[#allocation0]]
  $region26: #{tpu_custom_call.1} parent=0
    _
  %s5 = ssub.s32 1, %s3
  %s6 = scalar_select 0, %s5, %s3
  $region1: #{tpu_custom_call.1} parent=0
    #allocation3 [shape = 'u8[512]{0}', space=smem, size = 0x200, scoped, tag = 'output window, operand 0, single buffered']
    #allocation4 [shape = 's32[1]{0}', space=sflag, size = 0x4, scoped, tag = 'scoped memory for tpu_custom_call.1']
    %7 = vsyncpa [#allocation4], 0
    // Predicated region
    $region2: #{tpu_custom_call.1} parent=1 // pred_check
      _
    $region3: #{tpu_custom_call.1} parent=1 // pred_check_branch
      %9 = sbr.rel (0) target = $region5
    $region4: #{tpu_custom_call.1} parent=1 // pred_region
      _
    $region5: #{tpu_custom_call.1} parent=1 // pred_fallthru
      _
    // Predicated region
    $region6: #{tpu_custom_call.1} parent=1 // pred_check
      _
    $region7: #{tpu_custom_call.1} parent=1 // pred_check_branch
      %11 = sbr.rel (0) target = $region9
    $region8: #{tpu_custom_call.1} parent=1 // pred_region
      _
    $region9: #{tpu_custom_call.1} parent=1 // pred_fallthru
      _
    %p12 = scmp.eq.s32.totalorder 0, 0
    // Predicated region
    $region10: #{tpu_custom_call.1} parent=1 // pred_check
      %p13 = pneg %p12
    $region11: #{tpu_custom_call.1} parent=1 // pred_check_branch
      %15 = sbr.rel (%p13) target = $region13
    $region12: #{tpu_custom_call.1} parent=1 // pred_region
      %s16 = scalar_lea.smem [#allocation2], 0
      %17 = sst [smem:[%s16]] 0.0
    $region13: #{tpu_custom_call.1} parent=1 // pred_fallthru
      _
    %v18 = vld [vmem:[%s0] sm:$0xff]
    %v19 = vld [vmem:[%s1] sm:$0xff]
    %v20 = vlaneseq
    %v21 = vand.u32 %v20, 127
    %22 = vset.pattern.permute.xlu0 0
    %23 = vperm.xlu0 %22, %v19
    %v24 = vpop.permute.xlu0 %23
    %vm25 = vcmp.eq.s32.totalorder %v21, %v24
    %vm26 = vcmask 261120
    %v27 = vsel %vm26, %v18, -inf
    %28 = vmax.xlane.f32.xlu0 %v27
    %v29 = vpop.xlane.xlu0 %28
    %v30 = vsub.f32 %v18, %v29
    %v31 = vmul.f32 %v30, 1.442695
    %v32 = vpow.pop %v31
    %v33 = vsel %vm26, %v32, 0.0
    %34 = vadd.xlane.f32.xlu0 %v33
    %v35 = vpop.xlane.xlu0 %34
    %v36 = vlog2.pop %v35
    %v37 = vmul.f32 %v36, 0.6931472
    %v38 = vsel %vm25, %v30, 0.0
    %v39 = vsel %vm26, %v38, 0.0
    %40 = vadd.xlane.f32.xlu0 %v39
    %v41 = vpop.xlane.xlu0 %40
    %v42 = vsub.f32 %v37, %v41
    %v43 = vlaneseq
    %v44 = vshrl.u32 %v43, 7
    %s45 = smul.u32 0, 8
    %v46 = vstv %s45
    %v47 = vadd.s32 %v44, %v46
    %vm48 = vcmp.lt.s32.totalorder %v47, 8
    %s49 = sld [smem:[#allocation2]]
    %v50 = vsel %vm48, %v42, 0.0
    %vm51 = vcmask 7168
    %v52 = vsel %vm51, %v50, 0.0
    %53 = vadd.xlane.f32.xlu0 %v52
    %v54 = vpop.xlane.xlu0 %53
    %v55 = vrot.slane %v54, 4
    %v56 = vadd.f32 %v54, %v55
    %v57 = vrot.slane %v56, 2
    %v58 = vadd.f32 %v56, %v57
    %v59 = vrot.slane %v58, 1
    %v60 = vadd.f32 %v58, %v59
    %s61 = vtos %v60
    %s62 = sadd.f32 %s49, %s61
    %s63 = scalar_lea.smem [#allocation2], 0
    %64 = sst [smem:[%s63]] %s62
    // Predicated region
    $region14: #{tpu_custom_call.1} parent=1 // pred_check
      %p65 = pneg %p12
    $region15: #{tpu_custom_call.1} parent=1 // pred_check_branch
      %67 = sbr.rel (%p65) target = $region17
    $region16: #{tpu_custom_call.1} parent=1 // pred_region
      %s68 = sld [smem:[#allocation2]]
      %s69 = smul.f32 %s68, 0.125
      %s70 = scalar_lea.smem [#allocation3], 0
      %71 = sst [smem:[%s70]] %s69
    $region17: #{tpu_custom_call.1} parent=1 // pred_fallthru
      _
    // Predicated region
    $region18: #{tpu_custom_call.1} parent=1 // pred_check
      _
    $region19: #{tpu_custom_call.1} parent=1 // pred_check_branch
      %73 = sbr.rel (0) target = $region21
    $region20: #{tpu_custom_call.1} parent=1 // pred_region
      %75 = vsyncadd [#allocation4], 0
      %s77 = sshll.u32 %s2, 4
      %s78 = int_to_ptr.hbm [resolvable:$true] %s77
      %80 = dma.smem_to_hbm [#allocation3], 16, %s78, [#allocation4]
    $region21: #{tpu_custom_call.1} parent=1 // pred_fallthru
      _
    // Predicated region
    $region22: #{tpu_custom_call.1} parent=1 // pred_check
      _
    $region23: #{tpu_custom_call.1} parent=1 // pred_check_branch
      %82 = sbr.rel (0) target = $region25
    $region24: #{tpu_custom_call.1} parent=1 // pred_region
      %84 = dma.done [#allocation4], 16
    $region25: #{tpu_custom_call.1} parent=1 // pred_fallthru
      _
    %85 = sfence
    %86 = vsyncpa [#allocation4], 1

</llo_original>
